<compile_context>
chip_gen: v7x
topology: tpu7x:2x2x1
jax: 0.10.0
libtpu: 0.0.40
codegen_flags: <defaults>
</compile_context>

<pallas_src>
import math

import jax
import jax.numpy as jnp
from jax.experimental import pallas as pl
from jax.experimental.pallas import tpu as pltpu

_LANE = 128
_SUBLANE = 8


def _round_up(v, m):
    return ((v + m - 1) // m) * m


def _drop_path_kernel(x_ref, m_ref, o_ref):
    # (TM, TN) * (TM, 1) broadcast multiply.  Mask is f32 with 1/keep_prob
    # folded in; the product is cast back to the output dtype.
    o_ref[...] = (x_ref[...] * m_ref[...]).astype(o_ref.dtype)


def drop_path(x, drop_prob: float = 0.0, training: bool = False, *, key=None):
    """JAX/Pallas equivalent of the reference drop_path() (sample dim = dim 1)."""
    if not training or not drop_prob:
        return x
    keep_prob = 1.0 - float(drop_prob)

    if key is None:
        raise ValueError(
            "drop_path: an explicit PRNG `key` is required when training with "
            "drop_prob > 0 (otherwise the drop pattern repeats every call).")

    a = x.shape[0]
    b = x.shape[1]
    n = int(math.prod(x.shape[2:]))  # == 1 for 2-D inputs

    # Per-sample mask in {0, 1/keep_prob} (kept in f32), matching
    # torch: floor(keep_prob + U[0,1)), then x.div(keep_prob) * mask.
    u = jax.random.uniform(key, (b,), dtype=jnp.float32)
    mask = jnp.floor(jnp.float32(keep_prob) + u) * jnp.float32(1.0 / keep_prob)

    # Lane-dense fallback: a Pallas output block with last dim < 128 lowers to
    # masked partial stores and wastes 127/128 of each vreg; for these (tiny)
    # shapes the fused XLA multiply is strictly better.
    if n < _LANE:
        bshape = (1, b) + (1,) * (x.ndim - 2)
        return (x * mask.reshape(bshape)).astype(x.dtype)

    m_rows = a * b
    # Row-major reshapes only (no transposes): row r belongs to sample r % b.
    x_flat = x.reshape(m_rows, n)
    row_mask = jnp.broadcast_to(mask[None, :], (a, b)).reshape(m_rows, 1)

    itemsize = jnp.dtype(x.dtype).itemsize

    # ---- tile selection (HBM-bandwidth bound => big blocks) ----------------
    # Grow the lane axis first (up to 2048 cols), then rows (up to 512):
    # ~4 MiB f32 blocks.  Full extents are always legal block dims; otherwise
    # the targets are (8,128)-aligned and edge blocks are handled by Pallas.
    tn = n if n <= 2048 else 2048
    tm = m_rows if m_rows <= 512 else 512

    grid_r = pl.cdiv(m_rows, tm)
    grid_c = pl.cdiv(n, tn)
    # Keep >=2 parallel grid steps for non-trivial sizes so v7x's two
    # TensorCores both get work (prefer splitting the lane axis).
    if grid_r * grid_c == 1 and m_rows * n * itemsize > (1 << 20):
        if n >= 2 * _LANE:
            tn = _round_up(pl.cdiv(n, 2), _LANE)
        elif m_rows >= 2 * _SUBLANE:
            tm = _round_up(pl.cdiv(m_rows, 2), _SUBLANE)
        grid_r = pl.cdiv(m_rows, tm)
        grid_c = pl.cdiv(n, tn)
    grid = (grid_r, grid_c)

    # VMEM budget: double-buffered input + output blocks, plus the (lane-
    # padded) f32 mask buffers, plus headroom.  Cap at 48 MiB for v7x (64 MiB
    # physical VMEM per TensorCore).
    block_bytes = tm * tn * itemsize
    mask_buf_bytes = _round_up(tm, _SUBLANE) * _LANE * 4
    vmem_limit = int(4 * block_bytes + 2 * mask_buf_bytes + (4 << 20))
    vmem_limit = min(vmem_limit, 48 << 20)

    cost = pl.CostEstimate(
        flops=m_rows * n,
        transcendentals=0,
        bytes_accessed=2 * m_rows * n * itemsize + m_rows * 4,
    )

    out_flat = pl.pallas_call(
        _drop_path_kernel,
        out_shape=jax.ShapeDtypeStruct((m_rows, n), x.dtype),
        grid_spec=pl.GridSpec(
            grid=grid,
            in_specs=[
                pl.BlockSpec((tm, tn), lambda i, j: (i, j)),
                # Column axis is innermost, so this tiny (tm, 1) mask block is
                # only re-fetched when the row block changes (fetched once
                # when grid_r == 1).
                pl.BlockSpec((tm, 1), lambda i, j: (i, 0)),
            ],
            out_specs=pl.BlockSpec((tm, tn), lambda i, j: (i, j)),
        ),
        compiler_params=pltpu.CompilerParams(
            dimension_semantics=("parallel", "parallel"),
            vmem_limit_bytes=vmem_limit,
        ),
        cost_estimate=cost,
    )(x_flat, row_mask)

    return out_flat.reshape(x.shape)


class DropPath:
    """Mirror of the PyTorch DropPath module (no parameters)."""

    def __init__(self, drop_prob=None):
        self.drop_prob = drop_prob
        self.training = True

    def __call__(self, x, key=None):
        return drop_path(x, self.drop_prob, self.training, key=key)


def _check_per_sample(x, y, keep_prob, rtol=1e-5, atol=1e-5):
    x32 = jnp.asarray(x, jnp.float32)
    y32 = jnp.asarray(y, jnp.float32)
    ok = True
    for bi in range(x.shape[1]):
        xb = x32[:, bi]
        yb = y32[:, bi]
        dropped = bool(jnp.allclose(yb, 0.0, atol=atol))
        kept = bool(jnp.allclose(yb, xb / keep_prob, rtol=rtol, atol=atol))
        ok = ok and (dropped or kept)
    return ok


if __name__ == "__main__":
    root = jax.random.PRNGKey(0)
    kx3, kx4, kxb, km3, km4, kmb = jax.random.split(root, 6)

    drop_prob = 0.3
    keep_prob = 1.0 - drop_prob
    mod = DropPath(drop_prob)

    # (seq, batch, hidden): dim 1 is the sample dim, per the module docstring.
    x3 = jax.random.normal(kx3, (8, 2, 256), dtype=jnp.float32)
    y3 = jax.block_until_ready(mod(x3, key=km3))
    assert _check_per_sample(x3, y3, keep_prob), "bad mask (3-D, pallas path)"

    # 4-D input exercising the general trailing-dim flatten (n = 256 >= 128).
    x4 = jax.random.normal(kx4, (4, 2, 16, 16), dtype=jnp.float32)
    y4 = jax.block_until_ready(mod(x4, key=km4))
    assert _check_per_sample(x4, y4, keep_prob), "bad mask (4-D, pallas path)"

    # bf16 input: mask stays f32, only the product is cast to bf16.
    xb = jax.random.normal(kxb, (8, 2, 256), dtype=jnp.bfloat16)
    yb = jax.block_until_ready(mod(xb, key=kmb))
    assert _check_per_sample(xb, yb, keep_prob, rtol=2e-2, atol=2e-2), \
        "bad mask (bf16)"

    # Small trailing dim (n < 128): lane-dense XLA fallback path.
    xs = jax.random.normal(kx3, (8, 2, 32), dtype=jnp.float32)
    ys = jax.block_until_ready(mod(xs, key=km3))
    assert _check_per_sample(xs, ys, keep_prob), "bad mask (small-n fallback)"

    # Eval path: identity.
    mod.training = False
    y_eval = jax.block_until_ready(mod(x3))
    assert jnp.allclose(y_eval, x3)

    print("KERNEL_OK")
</pallas_src>

<mosaic_0001>
module attributes {stable_mosaic.version = 11 : i64} {
  func.func @_drop_path_kernel(%arg0: i32, %arg1: i32, %arg2: memref<16x256xf32, #tpu.memory_space<vmem>>, %arg3: memref<16x1xf32, #tpu.memory_space<vmem>>, %arg4: memref<16x256xf32, #tpu.memory_space<vmem>>) attributes {dimension_semantics = [#tpu.dimension_semantics<parallel>, #tpu.dimension_semantics<parallel>], iteration_bounds = array<i64: 1, 1>, scalar_prefetch = 0 : i64, scratch_operands = 0 : i64, tpu.core_type = #tpu.core_type<tc>, window_params = [{transform_indices = @transform_0, window_bounds = array<i64: 16, 256>}, {transform_indices = @transform_1, window_bounds = array<i64: 16, 1>}, {transform_indices = @transform_2, window_bounds = array<i64: 16, 256>}]} {
    %c0 = arith.constant 0 : index
    %c0_0 = arith.constant 0 : index
    %0 = vector.load %arg2[%c0, %c0_0] : memref<16x256xf32, #tpu.memory_space<vmem>>, vector<16x256xf32>
    %c0_1 = arith.constant 0 : index
    %c0_2 = arith.constant 0 : index
    %1 = vector.load %arg3[%c0_1, %c0_2] : memref<16x1xf32, #tpu.memory_space<vmem>>, vector<16x1xf32>
    %2 = vector.broadcast %1 : vector<16x1xf32> to vector<16x256xf32>
    %3 = arith.mulf %0, %2 : vector<16x256xf32>
    %c0_3 = arith.constant 0 : index
    %c0_4 = arith.constant 0 : index
    %4 = vector.load %arg4[%c0_3, %c0_4] : memref<16x256xf32, #tpu.memory_space<vmem>>, vector<16x256xf32>
    tpu.vector_store %arg4[%c0_3, %c0_4], %3 {strides = array<i32>} : memref<16x256xf32, #tpu.memory_space<vmem>>, vector<16x256xf32>,
    return
  }
  func.func @transform_0(%arg0: i32, %arg1: i32) -> (i32, i32) {
    %c0_i32 = arith.constant 0 : i32
    return %arg0, %arg1 : i32, i32
  }
  func.func @transform_1(%arg0: i32, %arg1: i32) -> (i32, i32) {
    %c0_i32 = arith.constant 0 : i32
    %c0_i32_0 = arith.constant 0 : i32
    return %arg0, %c0_i32 : i32, i32
  }
  func.func @transform_2(%arg0: i32, %arg1: i32) -> (i32, i32) {
    %c0_i32 = arith.constant 0 : i32
    return %arg0, %arg1 : i32, i32
  }
}

</mosaic_0001>

<llo_original>
// kernel: tpu_custom_call.1
$region0: #{tpu_custom_call.1}
  #allocation0 [shape = 'u32[]', space=smem, size = 0x4, offset = 0x4, fixed_abs, tag = 'smem constant byte address 0x4 - core index']
  #allocation1 [shape = 'u32[144,128]{1,0:T(1,128)}', space=vmem, size = 0x12000, scoped, tag = 'internal scratch']
  %s0 = inlined_call_operand.hbm [shape: f32[16,256], index: 0, kind: input, shape index: {}]
  %s1 = inlined_call_operand.vmem [shape: f32[16,1], index: 1, kind: input, shape index: {}]
  %s2 = inlined_call_operand.hbm [shape: f32[16,256], index: 2, kind: output, shape index: {}]
  %s3 = sld [smem:[#allocation0]]
  $region22: #{tpu_custom_call.1} parent=0
    _
  %s5 = ssub.s32 1, %s3
  %s6 = scalar_select 0, %s5, %s3
  $region1: #{tpu_custom_call.1} parent=0
    #allocation2 [shape = 'u8[16384]{0}', space=vmem, size = 0x4000, scoped, tag = 'input window, operand 0, single buffered']
    #allocation3 [shape = 's32[1]{0}', space=sflag, size = 0x4, scoped, tag = 'scoped memory for tpu_custom_call.1']
    #allocation4 [shape = 's32[1]{0}', space=sflag, size = 0x4, scoped, tag = 'scoped memory for tpu_custom_call.1']
    #allocation5 [shape = 'u8[16384]{0}', space=vmem, size = 0x4000, scoped, tag = 'output window, operand 0, single buffered']
    %7 = vsyncpa [#allocation3], 0
    %8 = vsyncpa [#allocation4], 0
    // Predicated region
    $region2: #{tpu_custom_call.1} parent=1 // pred_check
      _
    $region3: #{tpu_custom_call.1} parent=1 // pred_check_branch
      %10 = sbr.rel (0) target = $region5
    $region4: #{tpu_custom_call.1} parent=1 // pred_region
      %s12 = ssub.s32 512, 512
      %13 = vsyncadd [#allocation3], %s12
      %s14 = sshll.u32 [#allocation2], 4
      %s15 = int_to_ptr.vmem [resolvable:$true] %s14
      %20 = dma.hbm_to_vmem [thread:$0]  %s0, 512, %s15, [#allocation3], 256, 256, 16
    $region5: #{tpu_custom_call.1} parent=1 // pred_fallthru
      _
    // Predicated region
    $region6: #{tpu_custom_call.1} parent=1 // pred_check
      _
    $region7: #{tpu_custom_call.1} parent=1 // pred_check_branch
      %22 = sbr.rel (0) target = $region9
    $region8: #{tpu_custom_call.1} parent=1 // pred_region
      _
    $region9: #{tpu_custom_call.1} parent=1 // pred_fallthru
      _
    // Predicated region
    $region10: #{tpu_custom_call.1} parent=1 // pred_check
      _
    $region11: #{tpu_custom_call.1} parent=1 // pred_check_branch
      %24 = sbr.rel (0) target = $region13
    $region12: #{tpu_custom_call.1} parent=1 // pred_region
      %25 = dma.done [#allocation3], 512
    $region13: #{tpu_custom_call.1} parent=1 // pred_fallthru
      _
    %v26 = vld [vmem:[#allocation2] sm:$0xff]
    %v27 = vld [vmem:[#allocation2 + $0x8] sm:$0xff]
    %v28 = vld [vmem:[#allocation2 + $0x10] sm:$0xff]
    %v29 = vld [vmem:[#allocation2 + $0x18] sm:$0xff]
    %v30 = vld [vmem:[%s1] sm:$0xff]
    %v31 = vld [vmem:[%s1 + $0x8] sm:$0xff]
    %33 = vset.pattern.permute.xlu0 0
    %34 = vperm.xlu0 %33, %v30
    %v35 = vpop.permute.xlu0 %34
    %38 = vset.pattern.permute.xlu0 0
    %39 = vperm.xlu0 %38, %v31
    %v40 = vpop.permute.xlu0 %39
    %v42 = vmul.f32 %v26, %v35
    %v43 = vmul.f32 %v27, %v35
    %v44 = vmul.f32 %v28, %v40
    %v45 = vmul.f32 %v29, %v40
    %46 = vst [vmem:[#allocation5] sm:$0xff] %v42
    %47 = vst [vmem:[#allocation5 + $0x8] sm:$0xff] %v43
    %48 = vst [vmem:[#allocation5 + $0x10] sm:$0xff] %v44
    %49 = vst [vmem:[#allocation5 + $0x18] sm:$0xff] %v45
    // Predicated region
    $region14: #{tpu_custom_call.1} parent=1 // pred_check
      _
    $region15: #{tpu_custom_call.1} parent=1 // pred_check_branch
      %51 = sbr.rel (0) target = $region17
    $region16: #{tpu_custom_call.1} parent=1 // pred_region
      %s53 = ssub.s32 512, 512
      %54 = vsyncadd [#allocation4], %s53
      %s55 = sshll.u32 [#allocation5], 4
      %s56 = int_to_ptr.vmem [resolvable:$true] %s55
      %61 = dma.vmem_to_hbm [thread:$0]  %s56, 512, %s2, [#allocation4], 256, 256, 16
    $region17: #{tpu_custom_call.1} parent=1 // pred_fallthru
      _
    // Predicated region
    $region18: #{tpu_custom_call.1} parent=1 // pred_check
      _
    $region19: #{tpu_custom_call.1} parent=1 // pred_check_branch
      %63 = sbr.rel (0) target = $region21
    $region20: #{tpu_custom_call.1} parent=1 // pred_region
      %64 = dma.done [#allocation4], 512
    $region21: #{tpu_custom_call.1} parent=1 // pred_fallthru
      _
    %65 = vsyncpa [#allocation3], 1
    %66 = vsyncpa [#allocation4], 1

</llo_original>
